<compile_context>
chip_gen: v7x
topology: tpu7x:2x2x1
jax: 0.10.0
libtpu: 0.0.40
codegen_flags: <defaults>
</compile_context>

<pallas_src>
import functools

import jax
import jax.numpy as jnp
from jax import lax
from jax.experimental import pallas as pl
from jax.experimental.pallas import tpu as pltpu


def _mish(x, approx_recip):
    # x * tanh(softplus(x)) with a single exp:
    #   tanh(softplus(x)) = t*(t+2) / (t*(t+2)+2),  t = exp(x)
    # Large-x clamp (threshold 20, like PyTorch softplus) keeps t finite.
    t = jnp.exp(jnp.minimum(x, 20.0))
    num = t * (t + 2.0)
    den = num + 2.0
    r = pl.reciprocal(den, approx=True) if approx_recip else 1.0 / den
    return jnp.where(x > 20.0, x, x * num * r)


def _silu(x, approx_recip):
    den = 1.0 + jnp.exp(-x)
    r = pl.reciprocal(den, approx=True) if approx_recip else 1.0 / den
    return x * r


def _conv1d_block_kernel(x_ref, w_ref, b_ref, g_ref, bt_ref, m_ref, mt_ref,
                         seg_ref, segt_ref, o_ref, xp_ref, *,
                         kernel_size, pad, in_len, hp_len, out_len, conv_len,
                         b_tile, eps, use_mish, approx_recip):
    # x_ref  : (B_TILE, C_in, H)      un-padded input block (native dtype)
    # w_ref  : (K, C_out, C_in)       conv weight (native dtype)
    # b_ref  : (C_out, 1) f32         conv bias
    # g_ref  : (C_out, 1) f32         GN gamma
    # bt_ref : (C_out, 1) f32         GN beta
    # m_ref  : (G, C_out) f32         group membership * 1/(cpg*L)
    # mt_ref : (C_out, G) f32         group membership (broadcast back)
    # seg_ref: (B_TILE, T) f32        valid-column selector per batch element
    # segt_ref:(T, B_TILE) f32        its transpose (stats gather)
    # o_ref  : (B_TILE, C_out, L)
    # xp_ref : (C_in, B_TILE*Hp)      VMEM scratch, zero-padded packed input
    K, H, L, T, Hp = kernel_size, in_len, out_len, conv_len, hp_len

    # ---- 1. zero-padded, lane-packed input: xp = [pad | x_b | pad]_b ----
    # (in-kernel halo; the 2*pad zero columns between consecutive batch
    #  elements guarantee no cross-batch contamination of the conv windows)
    xp_ref[...] = jnp.zeros_like(xp_ref)
    for b in range(b_tile):
        xp_ref[:, b * Hp + pad: b * Hp + pad + H] = x_ref[b]
    xp = xp_ref[...]

    # ---- 2. conv1d: K shifted MXU matmuls on a lane-dense RHS ----
    c_out = w_ref.shape[1]
    acc = jnp.zeros((c_out, T), jnp.float32)
    for k in range(K):                                   # K is tiny & static
        acc = acc + jnp.dot(w_ref[k], xp[:, k:k + T],
                            preferred_element_type=jnp.float32)
    acc = acc + b_ref[...]                               # (C_out, 1) broadcast

    # ---- 3. GroupNorm (two-pass, per batch element x group) ----
    seg = seg_ref[...]
    segt = segt_ref[...]
    m_s = m_ref[...]
    mt = mt_ref[...]

    sum_cb = jnp.dot(acc, segt, preferred_element_type=jnp.float32)       # (C_out, B)
    mean_gb = jnp.dot(m_s, sum_cb, preferred_element_type=jnp.float32)    # (G, B)
    mean_cb = jnp.dot(mt, mean_gb, preferred_element_type=jnp.float32)    # (C_out, B)
    mean_full = jnp.dot(mean_cb, seg, preferred_element_type=jnp.float32)  # (C_out, T)
    d = acc - mean_full
    ssq_cb = jnp.dot(d * d, segt, preferred_element_type=jnp.float32)     # (C_out, B)
    var_gb = jnp.dot(m_s, ssq_cb, preferred_element_type=jnp.float32)     # (G, B)
    inv_gb = lax.rsqrt(var_gb + eps)
    scale_cb = jnp.dot(mt, inv_gb,
                       preferred_element_type=jnp.float32) * g_ref[...]   # gamma folded
    scale_full = jnp.dot(scale_cb, seg, preferred_element_type=jnp.float32)
    y = d * scale_full + bt_ref[...]                     # one FMA on the full tile

    # ---- 4. activation (single-exp Mish / SiLU) ----
    out = _mish(y, approx_recip) if use_mish else _silu(y, approx_recip)

    # ---- 5. store per-batch windows back to NCL layout ----
    for b in range(b_tile):
        o_ref[b] = out[:, b * Hp: b * Hp + L].astype(o_ref.dtype)


def _vmem_limit_bytes():
    cap = 64 * 1024 * 1024                      # conservative fallback (v7x size)
    try:
        cap = int(pltpu.get_tpu_info().vmem_capacity_bytes)
    except Exception:
        pass
    # leave headroom for the compiler's own scratch / surrounding fusions
    return int(min(cap * 3 // 4, 100 * 1024 * 1024))


def _pick_batch_tile(batch, max_tile):
    divs = [d for d in range(1, batch + 1) if batch % d == 0 and d <= max_tile]
    if not divs:
        return 1
    best = max(divs)
    # prefer >= 2 grid steps (lets v7x split across its 2 TensorCores) as long
    # as the per-step tile keeps at least 2 batch elements packed in lanes.
    multi = [d for d in divs if batch // d >= 2]
    if multi and max(multi) >= 2:
        best = max(multi)
    return best


def conv1d_block(x, weight, bias, gamma, beta, *, n_groups, eps=1e-5,
                 mish=True):
    """Pallas equivalent of Conv1dBlock.forward.

    x:      (B, C_in, H)
    weight: (C_out, C_in, K)   bias: (C_out,)
    gamma:  (C_out,)           beta: (C_out,)
    returns (B, C_out, L) with L = H + 2*(K//2) - K + 1  (== H for odd K).
    """
    B, C_in, H = x.shape
    C_out, C_in_w, K = weight.shape
    assert C_in_w == C_in
    assert C_out % n_groups == 0
    pad = K // 2
    Hp = H + 2 * pad
    L = Hp - K + 1
    cpg = C_out // n_groups

    x_item = jnp.dtype(x.dtype).itemsize
    vmem_limit = _vmem_limit_bytes()
    # rough per-batch-element VMEM footprint: double-buffered IO blocks,
    # packed scratch and a few f32 full-width temporaries.
    per_batch = (2 * (C_in * H + C_out * L) * x_item + C_in * Hp * x_item
                 + 6 * C_out * Hp * 4)
    max_tile = max(1, min(64, (vmem_limit // 2) // max(per_batch, 1)))
    b_tile = _pick_batch_tile(B, max_tile)
    W = b_tile * Hp                 # packed lane width of the padded input
    T = W - (K - 1)                 # packed lane width of the conv output

    # ---- host-side prep: tiny constants only, no extra HBM pass over x ----
    w_k = jnp.transpose(weight, (2, 0, 1))              # (K, C_out, C_in)
    bias2 = bias.reshape(C_out, 1).astype(jnp.float32)
    gamma2 = gamma.reshape(C_out, 1).astype(jnp.float32)
    beta2 = beta.reshape(C_out, 1).astype(jnp.float32)

    gid = jnp.arange(C_out) // cpg
    m_scaled = ((jnp.arange(n_groups)[:, None] == gid[None, :])
                .astype(jnp.float32) / float(cpg * L))   # (G, C_out), 1/n folded
    mt = (gid[:, None] == jnp.arange(n_groups)[None, :]).astype(jnp.float32)

    t_idx = jnp.arange(T)
    seg = ((t_idx[None, :] // Hp == jnp.arange(b_tile)[:, None])
           & (t_idx[None, :] % Hp < L)).astype(jnp.float32)   # (B_TILE, T)
    seg_t = seg.T                                              # (T, B_TILE)

    kernel = functools.partial(
        _conv1d_block_kernel,
        kernel_size=K, pad=pad, in_len=H, hp_len=Hp, out_len=L, conv_len=T,
        b_tile=b_tile, eps=float(eps), use_mish=bool(mish),
        approx_recip=(jnp.dtype(x.dtype) == jnp.dtype(jnp.bfloat16)))

    cost = pl.CostEstimate(
        flops=int(2 * B * C_out * C_in * K * L + 12 * B * C_out * L),
        transcendentals=int(2 * B * C_out * L),
        bytes_accessed=int(x.size * x_item
                           + weight.size * jnp.dtype(weight.dtype).itemsize
                           + B * C_out * L * x_item))

    out = pl.pallas_call(
        kernel,
        out_shape=jax.ShapeDtypeStruct((B, C_out, L), x.dtype),
        grid_spec=pltpu.PrefetchScalarGridSpec(
            num_scalar_prefetch=0,
            grid=(B // b_tile,),
            in_specs=[
                pl.BlockSpec((b_tile, C_in, H), lambda i: (i, 0, 0)),
                pl.BlockSpec((K, C_out, C_in), lambda i: (0, 0, 0)),
                pl.BlockSpec((C_out, 1), lambda i: (0, 0)),
                pl.BlockSpec((C_out, 1), lambda i: (0, 0)),
                pl.BlockSpec((C_out, 1), lambda i: (0, 0)),
                pl.BlockSpec((n_groups, C_out), lambda i: (0, 0)),
                pl.BlockSpec((C_out, n_groups), lambda i: (0, 0)),
                pl.BlockSpec((b_tile, T), lambda i: (0, 0)),
                pl.BlockSpec((T, b_tile), lambda i: (0, 0)),
            ],
            out_specs=pl.BlockSpec((b_tile, C_out, L), lambda i: (i, 0, 0)),
            scratch_shapes=[pltpu.VMEM((C_in, W), x.dtype)],
        ),
        compiler_params=pltpu.CompilerParams(
            dimension_semantics=("parallel",),   # shard batch tiles across TCs
            vmem_limit_bytes=vmem_limit),
        cost_estimate=cost,
    )(x, w_k, bias2, gamma2, beta2, m_scaled, mt, seg, seg_t)
    return out


def conv1d_block_ref(x, weight, bias, gamma, beta, *, n_groups, eps=1e-5,
                     mish=True):
    """Pure-JAX reference (conv -> group norm -> mish/silu), all f32."""
    K = weight.shape[-1]
    pad = K // 2
    y = lax.conv_general_dilated(
        x.astype(jnp.float32), weight.astype(jnp.float32),
        window_strides=(1,), padding=[(pad, pad)],
        dimension_numbers=('NCH', 'OIH', 'NCH'))
    y = y + bias.astype(jnp.float32)[None, :, None]
    B, C, L = y.shape
    cpg = C // n_groups
    yg = y.reshape(B, n_groups, cpg, L)
    mean = yg.mean(axis=(2, 3), keepdims=True)
    var = yg.var(axis=(2, 3), keepdims=True)
    yn = ((yg - mean) / jnp.sqrt(var + eps)).reshape(B, C, L)
    yn = (yn * gamma.astype(jnp.float32)[None, :, None]
          + beta.astype(jnp.float32)[None, :, None])
    if mish:
        return yn * jnp.tanh(jax.nn.softplus(yn))
    return yn * jax.nn.sigmoid(yn)


def _run_case(key, *, B, C_in, C_out, H, K, n_groups, mish, dtype, rtol, atol):
    k1, k2, k3, k4, k5 = jax.random.split(key, 5)
    x = jax.random.normal(k1, (B, C_in, H), dtype=jnp.float32)
    weight = 0.3 * jax.random.normal(k2, (C_out, C_in, K), dtype=jnp.float32)
    bias = 0.1 * jax.random.normal(k3, (C_out,), dtype=jnp.float32)
    gamma = 1.0 + 0.1 * jax.random.normal(k4, (C_out,), dtype=jnp.float32)
    beta = 0.1 * jax.random.normal(k5, (C_out,), dtype=jnp.float32)

    out = conv1d_block(x.astype(dtype), weight.astype(dtype), bias, gamma,
                       beta, n_groups=n_groups, mish=mish)
    out = jax.block_until_ready(out)

    ref = conv1d_block_ref(x, weight, bias, gamma, beta, n_groups=n_groups,
                           mish=mish)
    assert out.shape == ref.shape, (out.shape, ref.shape)
    out_f32 = out.astype(jnp.float32)
    assert bool(jnp.all(jnp.isfinite(out_f32)))
    max_err = float(jnp.max(jnp.abs(out_f32 - ref)))
    assert jnp.allclose(out_f32, ref, rtol=rtol, atol=atol), max_err


if __name__ == "__main__":
    key = jax.random.PRNGKey(0)
    k1, k2, k3 = jax.random.split(key, 3)

    # Small shapes consistent with [batch, channels, horizon].
    _run_case(k1, B=2, C_in=4, C_out=16, H=16, K=3, n_groups=8, mish=True,
              dtype=jnp.float32, rtol=1e-4, atol=1e-4)

    # Batch-tiled path (B_TILE=4, 2 grid steps), K=5, Mish and SiLU.
    _run_case(k2, B=8, C_in=8, C_out=32, H=32, K=5, n_groups=8, mish=True,
              dtype=jnp.float32, rtol=1e-4, atol=1e-4)
    _run_case(k3, B=8, C_in=8, C_out=32, H=32, K=5, n_groups=8, mish=False,
              dtype=jnp.float32, rtol=1e-4, atol=1e-4)

    # bf16 smoke test: native bf16 MXU operands + approx-reciprocal activation.
    _run_case(k1, B=4, C_in=8, C_out=16, H=16, K=3, n_groups=4, mish=True,
              dtype=jnp.bfloat16, rtol=1e-1, atol=1e-1)

    print("KERNEL_OK")
</pallas_src>

<mosaic_0001>
module attributes {stable_mosaic.version = 11 : i64} {
  func.func @_conv1d_block_kernel(%arg0: i32, %arg1: memref<2x4x16xf32, #tpu.memory_space<vmem>>, %arg2: memref<3x16x4xf32, #tpu.memory_space<vmem>>, %arg3: memref<16x1xf32, #tpu.memory_space<vmem>>, %arg4: memref<16x1xf32, #tpu.memory_space<vmem>>, %arg5: memref<16x1xf32, #tpu.memory_space<vmem>>, %arg6: memref<8x16xf32, #tpu.memory_space<vmem>>, %arg7: memref<16x8xf32, #tpu.memory_space<vmem>>, %arg8: memref<2x34xf32, #tpu.memory_space<vmem>>, %arg9: memref<34x2xf32, #tpu.memory_space<vmem>>, %arg10: memref<2x16x16xf32, #tpu.memory_space<vmem>>, %arg11: memref<4x36xf32, #tpu.memory_space<vmem>>) attributes {dimension_semantics = [#tpu.dimension_semantics<parallel>], iteration_bounds = array<i64: 1>, scalar_prefetch = 0 : i64, scratch_operands = 1 : i64, tpu.core_type = #tpu.core_type<tc>, window_params = [{transform_indices = @transform_0, window_bounds = array<i64: 2, 4, 16>}, {pipeline_mode = #tpu.pipeline_mode<synchronous>, transform_indices = @transform_1, window_bounds = array<i64: 3, 16, 4>}, {pipeline_mode = #tpu.pipeline_mode<synchronous>, transform_indices = @transform_2, window_bounds = array<i64: 16, 1>}, {pipeline_mode = #tpu.pipeline_mode<synchronous>, transform_indices = @transform_3, window_bounds = array<i64: 16, 1>}, {pipeline_mode = #tpu.pipeline_mode<synchronous>, transform_indices = @transform_4, window_bounds = array<i64: 16, 1>}, {pipeline_mode = #tpu.pipeline_mode<synchronous>, transform_indices = @transform_5, window_bounds = array<i64: 8, 16>}, {pipeline_mode = #tpu.pipeline_mode<synchronous>, transform_indices = @transform_6, window_bounds = array<i64: 16, 8>}, {pipeline_mode = #tpu.pipeline_mode<synchronous>, transform_indices = @transform_7, window_bounds = array<i64: 2, 34>}, {pipeline_mode = #tpu.pipeline_mode<synchronous>, transform_indices = @transform_8, window_bounds = array<i64: 34, 2>}, {transform_indices = @transform_9, window_bounds = array<i64: 2, 16, 16>}]} {
    %cst = arith.constant 0.000000e+00 : f32
    %0 = vector.broadcast %cst : f32 to vector<4x36xf32>
    %c0 = arith.constant 0 : index
    %c0_0 = arith.constant 0 : index
    %1 = vector.load %arg11[%c0, %c0_0] : memref<4x36xf32, #tpu.memory_space<vmem>>, vector<4x36xf32>
    tpu.vector_store %arg11[%c0, %c0_0], %0 {strides = array<i32>} : memref<4x36xf32, #tpu.memory_space<vmem>>, vector<4x36xf32>,
    %c0_1 = arith.constant 0 : index
    %c0_2 = arith.constant 0 : index
    %c0_3 = arith.constant 0 : index
    %2 = vector.load %arg1[%c0_1, %c0_2, %c0_3] : memref<2x4x16xf32, #tpu.memory_space<vmem>>, vector<1x4x16xf32>
    %3 = vector.shape_cast %2 : vector<1x4x16xf32> to vector<4x16xf32>
    %c0_4 = arith.constant 0 : index
    %c1 = arith.constant 1 : index
    %4 = vector.load %arg11[%c0_4, %c1] : memref<4x36xf32, #tpu.memory_space<vmem>>, vector<4x16xf32>
    tpu.vector_store %arg11[%c0_4, %c1], %3 {strides = array<i32>} : memref<4x36xf32, #tpu.memory_space<vmem>>, vector<4x16xf32>,
    %c1_5 = arith.constant 1 : index
    %c0_6 = arith.constant 0 : index
    %c0_7 = arith.constant 0 : index
    %5 = vector.load %arg1[%c1_5, %c0_6, %c0_7] : memref<2x4x16xf32, #tpu.memory_space<vmem>>, vector<1x4x16xf32>
    %6 = vector.shape_cast %5 : vector<1x4x16xf32> to vector<4x16xf32>
    %c0_8 = arith.constant 0 : index
    %c19 = arith.constant 19 : index
    %7 = vector.load %arg11[%c0_8, %c19] : memref<4x36xf32, #tpu.memory_space<vmem>>, vector<4x16xf32>
    tpu.vector_store %arg11[%c0_8, %c19], %6 {strides = array<i32>} : memref<4x36xf32, #tpu.memory_space<vmem>>, vector<4x16xf32>,
    %c0_9 = arith.constant 0 : index
    %c0_10 = arith.constant 0 : index
    %8 = vector.load %arg11[%c0_9, %c0_10] : memref<4x36xf32, #tpu.memory_space<vmem>>, vector<4x36xf32>
    %cst_11 = arith.constant 0.000000e+00 : f32
    %9 = vector.broadcast %cst_11 : f32 to vector<16x34xf32>
    %c0_12 = arith.constant 0 : index
    %c0_13 = arith.constant 0 : index
    %c0_14 = arith.constant 0 : index
    %10 = vector.load %arg2[%c0_12, %c0_13, %c0_14] : memref<3x16x4xf32, #tpu.memory_space<vmem>>, vector<1x16x4xf32>
    %11 = vector.shape_cast %10 : vector<1x16x4xf32> to vector<16x4xf32>
    %12 = vector.extract_strided_slice %8 {offsets = [0, 0], sizes = [4, 34], strides = [1, 1]} : vector<4x36xf32> to vector<4x34xf32>
    %cst_15 = arith.constant dense<0.000000e+00> : vector<16x34xf32>
    %13 = tpu.matmul %11, %12, %cst_15 {dimension_numbers = #tpu.dot_dimension_numbers<[1], [0], [0], [1], [0, 0, 1, 1], [], []>} : vector<16x4xf32>, vector<4x34xf32>, vector<16x34xf32> -> vector<16x34xf32>
    %14 = arith.addf %9, %13 : vector<16x34xf32>
    %c1_16 = arith.constant 1 : index
    %c0_17 = arith.constant 0 : index
    %c0_18 = arith.constant 0 : index
    %15 = vector.load %arg2[%c1_16, %c0_17, %c0_18] : memref<3x16x4xf32, #tpu.memory_space<vmem>>, vector<1x16x4xf32>
    %16 = vector.shape_cast %15 : vector<1x16x4xf32> to vector<16x4xf32>
    %17 = vector.extract_strided_slice %8 {offsets = [0, 1], sizes = [4, 34], strides = [1, 1]} : vector<4x36xf32> to vector<4x34xf32>
    %cst_19 = arith.constant dense<0.000000e+00> : vector<16x34xf32>
    %18 = tpu.matmul %16, %17, %cst_19 {dimension_numbers = #tpu.dot_dimension_numbers<[1], [0], [0], [1], [0, 0, 1, 1], [], []>} : vector<16x4xf32>, vector<4x34xf32>, vector<16x34xf32> -> vector<16x34xf32>
    %19 = arith.addf %14, %18 : vector<16x34xf32>
    %c2 = arith.constant 2 : index
    %c0_20 = arith.constant 0 : index
    %c0_21 = arith.constant 0 : index
    %20 = vector.load %arg2[%c2, %c0_20, %c0_21] : memref<3x16x4xf32, #tpu.memory_space<vmem>>, vector<1x16x4xf32>
    %21 = vector.shape_cast %20 : vector<1x16x4xf32> to vector<16x4xf32>
    %22 = vector.extract_strided_slice %8 {offsets = [0, 2], sizes = [4, 34], strides = [1, 1]} : vector<4x36xf32> to vector<4x34xf32>
    %cst_22 = arith.constant dense<0.000000e+00> : vector<16x34xf32>
    %23 = tpu.matmul %21, %22, %cst_22 {dimension_numbers = #tpu.dot_dimension_numbers<[1], [0], [0], [1], [0, 0, 1, 1], [], []>} : vector<16x4xf32>, vector<4x34xf32>, vector<16x34xf32> -> vector<16x34xf32>
    %24 = arith.addf %19, %23 : vector<16x34xf32>
    %c0_23 = arith.constant 0 : index
    %c0_24 = arith.constant 0 : index
    %25 = vector.load %arg3[%c0_23, %c0_24] : memref<16x1xf32, #tpu.memory_space<vmem>>, vector<16x1xf32>
    %26 = vector.broadcast %25 : vector<16x1xf32> to vector<16x34xf32>
    %27 = arith.addf %24, %26 : vector<16x34xf32>
    %c0_25 = arith.constant 0 : index
    %c0_26 = arith.constant 0 : index
    %28 = vector.load %arg8[%c0_25, %c0_26] : memref<2x34xf32, #tpu.memory_space<vmem>>, vector<2x34xf32>
    %c0_27 = arith.constant 0 : index
    %c0_28 = arith.constant 0 : index
    %29 = vector.load %arg9[%c0_27, %c0_28] : memref<34x2xf32, #tpu.memory_space<vmem>>, vector<34x2xf32>
    %c0_29 = arith.constant 0 : index
    %c0_30 = arith.constant 0 : index
    %30 = vector.load %arg6[%c0_29, %c0_30] : memref<8x16xf32, #tpu.memory_space<vmem>>, vector<8x16xf32>
    %c0_31 = arith.constant 0 : index
    %c0_32 = arith.constant 0 : index
    %31 = vector.load %arg7[%c0_31, %c0_32] : memref<16x8xf32, #tpu.memory_space<vmem>>, vector<16x8xf32>
    %cst_33 = arith.constant dense<0.000000e+00> : vector<16x2xf32>
    %32 = tpu.matmul %27, %29, %cst_33 {dimension_numbers = #tpu.dot_dimension_numbers<[1], [0], [0], [1], [0, 0, 1, 1], [], []>} : vector<16x34xf32>, vector<34x2xf32>, vector<16x2xf32> -> vector<16x2xf32>
    %cst_34 = arith.constant dense<0.000000e+00> : vector<8x2xf32>
    %33 = tpu.matmul %30, %32, %cst_34 {dimension_numbers = #tpu.dot_dimension_numbers<[1], [0], [0], [1], [0, 0, 1, 1], [], []>} : vector<8x16xf32>, vector<16x2xf32>, vector<8x2xf32> -> vector<8x2xf32>
    %cst_35 = arith.constant dense<0.000000e+00> : vector<16x2xf32>
    %34 = tpu.matmul %31, %33, %cst_35 {dimension_numbers = #tpu.dot_dimension_numbers<[1], [0], [0], [1], [0, 0, 1, 1], [], []>} : vector<16x8xf32>, vector<8x2xf32>, vector<16x2xf32> -> vector<16x2xf32>
    %cst_36 = arith.constant dense<0.000000e+00> : vector<16x34xf32>
    %35 = tpu.matmul %34, %28, %cst_36 {dimension_numbers = #tpu.dot_dimension_numbers<[1], [0], [0], [1], [0, 0, 1, 1], [], []>} : vector<16x2xf32>, vector<2x34xf32>, vector<16x34xf32> -> vector<16x34xf32>
    %36 = arith.subf %27, %35 : vector<16x34xf32>
    %37 = arith.mulf %36, %36 : vector<16x34xf32>
    %cst_37 = arith.constant dense<0.000000e+00> : vector<16x2xf32>
    %38 = tpu.matmul %37, %29, %cst_37 {dimension_numbers = #tpu.dot_dimension_numbers<[1], [0], [0], [1], [0, 0, 1, 1], [], []>} : vector<16x34xf32>, vector<34x2xf32>, vector<16x2xf32> -> vector<16x2xf32>
    %cst_38 = arith.constant dense<0.000000e+00> : vector<8x2xf32>
    %39 = tpu.matmul %30, %38, %cst_38 {dimension_numbers = #tpu.dot_dimension_numbers<[1], [0], [0], [1], [0, 0, 1, 1], [], []>} : vector<8x16xf32>, vector<16x2xf32>, vector<8x2xf32> -> vector<8x2xf32>
    %cst_39 = arith.constant 9.99999974E-6 : f32
    %40 = vector.broadcast %cst_39 : f32 to vector<8x2xf32>
    %41 = arith.addf %39, %40 : vector<8x2xf32>
    %42 = math.rsqrt %41 : vector<8x2xf32>
    %cst_40 = arith.constant dense<0.000000e+00> : vector<16x2xf32>
    %43 = tpu.matmul %31, %42, %cst_40 {dimension_numbers = #tpu.dot_dimension_numbers<[1], [0], [0], [1], [0, 0, 1, 1], [], []>} : vector<16x8xf32>, vector<8x2xf32>, vector<16x2xf32> -> vector<16x2xf32>
    %c0_41 = arith.constant 0 : index
    %c0_42 = arith.constant 0 : index
    %44 = vector.load %arg4[%c0_41, %c0_42] : memref<16x1xf32, #tpu.memory_space<vmem>>, vector<16x1xf32>
    %45 = vector.broadcast %44 : vector<16x1xf32> to vector<16x2xf32>
    %46 = arith.mulf %43, %45 : vector<16x2xf32>
    %cst_43 = arith.constant dense<0.000000e+00> : vector<16x34xf32>
    %47 = tpu.matmul %46, %28, %cst_43 {dimension_numbers = #tpu.dot_dimension_numbers<[1], [0], [0], [1], [0, 0, 1, 1], [], []>} : vector<16x2xf32>, vector<2x34xf32>, vector<16x34xf32> -> vector<16x34xf32>
    %48 = arith.mulf %36, %47 : vector<16x34xf32>
    %c0_44 = arith.constant 0 : index
    %c0_45 = arith.constant 0 : index
    %49 = vector.load %arg5[%c0_44, %c0_45] : memref<16x1xf32, #tpu.memory_space<vmem>>, vector<16x1xf32>
    %50 = vector.broadcast %49 : vector<16x1xf32> to vector<16x34xf32>
    %51 = arith.addf %48, %50 : vector<16x34xf32>
    %cst_46 = arith.constant 2.000000e+01 : f32
    %52 = vector.broadcast %cst_46 : f32 to vector<16x34xf32>
    %53 = arith.minimumf %51, %52 : vector<16x34xf32>
    %54 = math.exp %53 : vector<16x34xf32>
    %cst_47 = arith.constant 2.000000e+00 : f32
    %55 = vector.broadcast %cst_47 : f32 to vector<16x34xf32>
    %56 = arith.addf %54, %55 : vector<16x34xf32>
    %57 = arith.mulf %54, %56 : vector<16x34xf32>
    %cst_48 = arith.constant 2.000000e+00 : f32
    %58 = vector.broadcast %cst_48 : f32 to vector<16x34xf32>
    %59 = arith.addf %57, %58 : vector<16x34xf32>
    %cst_49 = arith.constant 1.000000e+00 : f32
    %60 = vector.broadcast %cst_49 : f32 to vector<16x34xf32>
    %61 = arith.divf %60, %59 : vector<16x34xf32>
    %cst_50 = arith.constant 2.000000e+01 : f32
    %62 = vector.broadcast %cst_50 : f32 to vector<16x34xf32>
    %63 = arith.cmpf ogt, %51, %62 : vector<16x34xf32>
    %64 = arith.mulf %51, %57 : vector<16x34xf32>
    %65 = arith.mulf %64, %61 : vector<16x34xf32>
    %66 = arith.select %63, %51, %65 : vector<16x34xi1>, vector<16x34xf32>
    %67 = vector.extract_strided_slice %66 {offsets = [0, 0], sizes = [16, 16], strides = [1, 1]} : vector<16x34xf32> to vector<16x16xf32>
    %c0_51 = arith.constant 0 : index
    %c0_52 = arith.constant 0 : index
    %c0_53 = arith.constant 0 : index
    %68 = vector.load %arg10[%c0_51, %c0_52, %c0_53] : memref<2x16x16xf32, #tpu.memory_space<vmem>>, vector<1x16x16xf32>
    %69 = vector.shape_cast %68 : vector<1x16x16xf32> to vector<16x16xf32>
    %70 = vector.shape_cast %67 : vector<16x16xf32> to vector<1x16x16xf32>
    tpu.vector_store %arg10[%c0_51, %c0_52, %c0_53], %70 {strides = array<i32>} : memref<2x16x16xf32, #tpu.memory_space<vmem>>, vector<1x16x16xf32>,
    %71 = vector.extract_strided_slice %66 {offsets = [0, 18], sizes = [16, 16], strides = [1, 1]} : vector<16x34xf32> to vector<16x16xf32>
    %c1_54 = arith.constant 1 : index
    %c0_55 = arith.constant 0 : index
    %c0_56 = arith.constant 0 : index
    %72 = vector.load %arg10[%c1_54, %c0_55, %c0_56] : memref<2x16x16xf32, #tpu.memory_space<vmem>>, vector<1x16x16xf32>
    %73 = vector.shape_cast %72 : vector<1x16x16xf32> to vector<16x16xf32>
    %74 = vector.shape_cast %71 : vector<16x16xf32> to vector<1x16x16xf32>
    tpu.vector_store %arg10[%c1_54, %c0_55, %c0_56], %74 {strides = array<i32>} : memref<2x16x16xf32, #tpu.memory_space<vmem>>, vector<1x16x16xf32>,
    return
  }
  func.func @transform_0(%arg0: i32) -> (i32, i32, i32) {
    %c0_i32 = arith.constant 0 : i32
    %c0_i32_0 = arith.constant 0 : i32
    %c0_i32_1 = arith.constant 0 : i32
    return %arg0, %c0_i32, %c0_i32_0 : i32, i32, i32
  }
  func.func @transform_1(%arg0: i32) -> (i32, i32, i32) {
    %c0_i32 = arith.constant 0 : i32
    %c0_i32_0 = arith.constant 0 : i32
    %c0_i32_1 = arith.constant 0 : i32
    %c0_i32_2 = arith.constant 0 : i32
    return %c0_i32, %c0_i32_0, %c0_i32_1 : i32, i32, i32
  }
  func.func @transform_2(%arg0: i32) -> (i32, i32) {
    %c0_i32 = arith.constant 0 : i32
    %c0_i32_0 = arith.constant 0 : i32
    %c0_i32_1 = arith.constant 0 : i32
    return %c0_i32, %c0_i32_0 : i32, i32
  }
  func.func @transform_3(%arg0: i32) -> (i32, i32) {
    %c0_i32 = arith.constant 0 : i32
    %c0_i32_0 = arith.constant 0 : i32
    %c0_i32_1 = arith.constant 0 : i32
    return %c0_i32, %c0_i32_0 : i32, i32
  }
  func.func @transform_4(%arg0: i32) -> (i32, i32) {
    %c0_i32 = arith.constant 0 : i32
    %c0_i32_0 = arith.constant 0 : i32
    %c0_i32_1 = arith.constant 0 : i32
    return %c0_i32, %c0_i32_0 : i32, i32
  }
  func.func @transform_5(%arg0: i32) -> (i32, i32) {
    %c0_i32 = arith.constant 0 : i32
    %c0_i32_0 = arith.constant 0 : i32
    %c0_i32_1 = arith.constant 0 : i32
    return %c0_i32, %c0_i32_0 : i32, i32
  }
  func.func @transform_6(%arg0: i32) -> (i32, i32) {
    %c0_i32 = arith.constant 0 : i32
    %c0_i32_0 = arith.constant 0 : i32
    %c0_i32_1 = arith.constant 0 : i32
    return %c0_i32, %c0_i32_0 : i32, i32
  }
  func.func @transform_7(%arg0: i32) -> (i32, i32) {
    %c0_i32 = arith.constant 0 : i32
    %c0_i32_0 = arith.constant 0 : i32
    %c0_i32_1 = arith.constant 0 : i32
    return %c0_i32, %c0_i32_0 : i32, i32
  }
  func.func @transform_8(%arg0: i32) -> (i32, i32) {
    %c0_i32 = arith.constant 0 : i32
    %c0_i32_0 = arith.constant 0 : i32
    %c0_i32_1 = arith.constant 0 : i32
    return %c0_i32, %c0_i32_0 : i32, i32
  }
  func.func @transform_9(%arg0: i32) -> (i32, i32, i32) {
    %c0_i32 = arith.constant 0 : i32
    %c0_i32_0 = arith.constant 0 : i32
    %c0_i32_1 = arith.constant 0 : i32
    return %arg0, %c0_i32, %c0_i32_0 : i32, i32, i32
  }
}

</mosaic_0001>

<llo_original>
// kernel: tpu_custom_call.1
$region0: #{tpu_custom_call.1}
  #allocation0 [shape = 'u32[]', space=smem, size = 0x4, offset = 0x4, fixed_abs, tag = 'smem constant byte address 0x4 - core index']
  #allocation1 [shape = 'u32[144,128]{1,0:T(1,128)}', space=vmem, size = 0x12000, scoped, tag = 'internal scratch']
  #allocation2 [shape = 'f32[4,36]{1,0:T(4,128)}', space=vmem, size = 0x800, scoped, tag = 'scratch operand']
  %s0 = inlined_call_operand.vmem [shape: f32[2,4,16], index: 0, kind: input, shape index: {}]
  %s1 = inlined_call_operand.vmem [shape: f32[3,16,4], index: 1, kind: input, shape index: {}]
  %s2 = inlined_call_operand.vmem [shape: f32[16,1], index: 2, kind: input, shape index: {}]
  %s3 = inlined_call_operand.vmem [shape: f32[16,1], index: 3, kind: input, shape index: {}]
  %s4 = inlined_call_operand.vmem [shape: f32[16,1], index: 4, kind: input, shape index: {}]
  %s5 = inlined_call_operand.vmem [shape: f32[8,16], index: 5, kind: input, shape index: {}]
  %s6 = inlined_call_operand.vmem [shape: f32[16,8], index: 6, kind: input, shape index: {}]
  %s7 = inlined_call_operand.vmem [shape: f32[2,34], index: 7, kind: input, shape index: {}]
  %s8 = inlined_call_operand.vmem [shape: f32[34,2], index: 8, kind: input, shape index: {}]
  %s9 = inlined_call_operand.hbm [shape: f32[2,16,16], index: 9, kind: output, shape index: {}]
  %s10 = sld [smem:[#allocation0]]
  $region46: #{tpu_custom_call.1} parent=0
    _
  %s12 = ssub.s32 1, %s10
  %s13 = scalar_select 0, %s12, %s10
  $region1: #{tpu_custom_call.1} parent=0
    #allocation3 [shape = 'u8[16384]{0}', space=vmem, size = 0x4000, scoped, tag = 'output window, operand 0, single buffered']
    #allocation4 [shape = 's32[1]{0}', space=sflag, size = 0x4, scoped, tag = 'scoped memory for tpu_custom_call.1']
    %14 = vsyncpa [#allocation4], 0
    // Predicated region
    $region2: #{tpu_custom_call.1} parent=1 // pred_check
      _
    $region3: #{tpu_custom_call.1} parent=1 // pred_check_branch
      %16 = sbr.rel (0) target = $region5
    $region4: #{tpu_custom_call.1} parent=1 // pred_region
      _
    $region5: #{tpu_custom_call.1} parent=1 // pred_fallthru
      _
    // Predicated region
    $region6: #{tpu_custom_call.1} parent=1 // pred_check
      _
    $region7: #{tpu_custom_call.1} parent=1 // pred_check_branch
      %18 = sbr.rel (0) target = $region9
    $region8: #{tpu_custom_call.1} parent=1 // pred_region
      _
    $region9: #{tpu_custom_call.1} parent=1 // pred_fallthru
      _
    // Predicated region
    $region10: #{tpu_custom_call.1} parent=1 // pred_check
      _
    $region11: #{tpu_custom_call.1} parent=1 // pred_check_branch
      %20 = sbr.rel (0) target = $region13
    $region12: #{tpu_custom_call.1} parent=1 // pred_region
      _
    $region13: #{tpu_custom_call.1} parent=1 // pred_fallthru
      _
    // Predicated region
    $region14: #{tpu_custom_call.1} parent=1 // pred_check
      _
    $region15: #{tpu_custom_call.1} parent=1 // pred_check_branch
      %22 = sbr.rel (0) target = $region17
    $region16: #{tpu_custom_call.1} parent=1 // pred_region
      _
    $region17: #{tpu_custom_call.1} parent=1 // pred_fallthru
      _
    // Predicated region
    $region18: #{tpu_custom_call.1} parent=1 // pred_check
      _
    $region19: #{tpu_custom_call.1} parent=1 // pred_check_branch
      %24 = sbr.rel (0) target = $region21
    $region20: #{tpu_custom_call.1} parent=1 // pred_region
      _
    $region21: #{tpu_custom_call.1} parent=1 // pred_fallthru
      _
    // Predicated region
    $region22: #{tpu_custom_call.1} parent=1 // pred_check
      _
    $region23: #{tpu_custom_call.1} parent=1 // pred_check_branch
      %26 = sbr.rel (0) target = $region25
    $region24: #{tpu_custom_call.1} parent=1 // pred_region
      _
    $region25: #{tpu_custom_call.1} parent=1 // pred_fallthru
      _
    // Predicated region
    $region26: #{tpu_custom_call.1} parent=1 // pred_check
      _
    $region27: #{tpu_custom_call.1} parent=1 // pred_check_branch
      %28 = sbr.rel (0) target = $region29
    $region28: #{tpu_custom_call.1} parent=1 // pred_region
      _
    $region29: #{tpu_custom_call.1} parent=1 // pred_fallthru
      _
    // Predicated region
    $region30: #{tpu_custom_call.1} parent=1 // pred_check
      _
    $region31: #{tpu_custom_call.1} parent=1 // pred_check_branch
      %30 = sbr.rel (0) target = $region33
    $region32: #{tpu_custom_call.1} parent=1 // pred_region
      _
    $region33: #{tpu_custom_call.1} parent=1 // pred_fallthru
      _
    // Predicated region
    $region34: #{tpu_custom_call.1} parent=1 // pred_check
      _
    $region35: #{tpu_custom_call.1} parent=1 // pred_check_branch
      %32 = sbr.rel (0) target = $region37
    $region36: #{tpu_custom_call.1} parent=1 // pred_region
      _
    $region37: #{tpu_custom_call.1} parent=1 // pred_fallthru
      _
    %vm33 = vcmask 289792
    %34 = vst.msk [vmem:[#allocation2] sm:$0xf] %vm33, 0.0
    %v35 = vld [vmem:[%s0] sm:$0xf]
    %37 = vrot.lane.b32.xlu0 %v35, 1
    %v38 = vpop.permute.xlu0 %37
    %vm40 = vcmask 134152
    %41 = vst.msk [vmem:[#allocation2] sm:$0xf] %vm40, %v38
    %s42 = scalar_lea.vmem %s0, 4
    %v43 = vld [vmem:[%s42] sm:$0xf]
    %45 = vrot.lane.b32.xlu0 %v43, 19
    %v46 = vpop.permute.xlu0 %45
    %vm48 = vcmask 281752
    %49 = vst.msk [vmem:[#allocation2] sm:$0xf] %vm48, %v46
    %v50 = vld [vmem:[#allocation2] sm:$0xf]
    %v51 = vld [vmem:[%s1] sm:$0xff]
    %v52 = vld [vmem:[%s1 + $0x8] sm:$0xff]
    %s53 = scalar_lea.vmem %s1, 16
    %v54 = vld [vmem:[%s53] sm:$0xff]
    %v55 = vld [vmem:[%s53 + $0x8] sm:$0xff]
    %57 = vrot.lane.b32.xlu0 %v50, 127
    %v58 = vpop.permute.xlu0 %57
    %vm59 = vcmask 31744
    %v61 = vsel %vm59, %v54, 0
    %v64 = vsel %vm59, %v55, 0
    %vm66 = vcmask 1043456
    %v67 = vsel %vm66, %v58, 0
    %69 = vmatprep.subr.mxu0 0.0
    %70 = vmatpush1.msra.mxu0 %v67
    %71 = vmatprep.subr.mxu0 0.0
    %72 = vmatpush1.msra.mxu0 0.0
    %73 = vmatprep.subr.mxu0 0.0
    %74 = vmatpush1.msra.mxu0 0.0
    %75 = vmatprep.subr.mxu0 0.0
    %76 = vmatpush1.msra.mxu0 0.0
    %77 = vmatprep.subr.mxu0 0.0
    %78 = vmatpush1.msra.mxu0 0.0
    %79 = vmatprep.subr.mxu0 0.0
    %80 = vmatpush1.msra.mxu0 0.0
    %81 = vmatprep.subr.mxu0 0.0
    %82 = vmatpush1.msra.mxu0 0.0
    %83 = vmatprep.subr.mxu0 0.0
    %84 = vmatpush1.msra.mxu0 0.0
    %85 = vmatprep.subr.mxu0 0.0
    %86 = vmatpush1.msra.mxu0 0.0
    %87 = vmatprep.subr.mxu0 0.0
    %88 = vmatpush1.msra.mxu0 0.0
    %89 = vmatprep.subr.mxu0 0.0
    %90 = vmatpush1.msra.mxu0 0.0
    %91 = vmatprep.subr.mxu0 0.0
    %92 = vmatpush1.msra.mxu0 0.0
    %93 = vmatprep.subr.mxu0 0.0
    %94 = vmatpush1.msra.mxu0 0.0
    %95 = vmatprep.subr.mxu0 0.0
    %96 = vmatpush1.msra.mxu0 0.0
    %97 = vmatprep.subr.mxu0 0.0
    %98 = vmatpush1.msra.mxu0 0.0
    %99 = vmatprep.subr.mxu0 0.0
    %100 = vmatpush1.msra.mxu0 0.0
    %101 = vmatprep.subr.mxu0 0.0
    %102 = vmatpush1.msra.mxu0 0.0
    %103 = vmatprep.subr.mxu0 0.0
    %104 = vmatpush1.msra.mxu0 0.0
    %105 = vmatprep.subr.mxu0 0.0
    %106 = vmatpush1.msra.mxu0 0.0
    %107 = vmatprep.subr.mxu0 0.0
    %108 = vmatpush1.msra.mxu0 0.0
    %109 = vmatprep.subr.mxu0 0.0
    %110 = vmatpush1.msra.mxu0 0.0
    %111 = vmatprep.subr.mxu0 0.0
    %112 = vmatpush1.msra.mxu0 0.0
    %113 = vmatprep.subr.mxu0 0.0
    %114 = vmatpush1.msra.mxu0 0.0
    %115 = vmatprep.subr.mxu0 0.0
    %116 = vmatpush1.msra.mxu0 0.0
    %117 = vmatprep.subr.mxu0 0.0
    %118 = vmatpush1.msra.mxu0 0.0
    %119 = vmatprep.subr.mxu0 0.0
    %120 = vmatpush1.msra.mxu0 0.0
    %121 = vmatprep.subr.mxu0 0.0
    %122 = vmatpush1.msra.mxu0 0.0
    %123 = vmatprep.subr.mxu0 0.0
    %124 = vmatpush1.msra.mxu0 0.0
    %125 = vmatprep.subr.mxu0 0.0
    %126 = vmatpush1.msra.mxu0 0.0
    %127 = vmatprep.subr.mxu0 0.0
    %128 = vmatpush1.msra.mxu0 0.0
    %129 = vmatprep.subr.mxu0 0.0
    %130 = vmatpush1.msra.mxu0 0.0
    %131 = vmatprep.subr.mxu0 0.0
    %132 = vmatpush1.msra.mxu0 0.0
    %133 = vmatprep.mubr.f32.mxu0 0.0
    %134 = vmatmul.mubr.f32.gmra.mrb[0].mxu0 %v61
    %v135 = vpop.f32.mrb[0].mxu0
    %v136 = vadd.f32 0.0, %v135
    %v137 = vpop.f32.mrb[0].mxu0
    %138 = vmatprep.mubr.f32.mxu0 0.0
    %139 = vmatmul.mubr.f32.gmra.mrb[0].mxu0 %v64
    %v140 = vpop.f32.mrb[0].mxu0
    %v141 = vadd.f32 0.0, %v140
    %v142 = vpop.f32.mrb[0].mxu0
    %143 = vdwg.mxu0
    %v145 = vsel %vm59, %v51, 0
    %v148 = vsel %vm59, %v52, 0
    %v150 = vsel %vm66, %v50, 0
    %152 = vmatprep.subr.mxu0 0.0
    %153 = vmatpush1.msra.mxu0 %v150
    %154 = vmatprep.subr.mxu0 0.0
    %155 = vmatpush1.msra.mxu0 0.0
    %156 = vmatprep.subr.mxu0 0.0
    %157 = vmatpush1.msra.mxu0 0.0
    %158 = vmatprep.subr.mxu0 0.0
    %159 = vmatpush1.msra.mxu0 0.0
    %160 = vmatprep.subr.mxu0 0.0
    %161 = vmatpush1.msra.mxu0 0.0
    %162 = vmatprep.subr.mxu0 0.0
    %163 = vmatpush1.msra.mxu0 0.0
    %164 = vmatprep.subr.mxu0 0.0
    %165 = vmatpush1.msra.mxu0 0.0
    %166 = vmatprep.subr.mxu0 0.0
    %167 = vmatpush1.msra.mxu0 0.0
    %168 = vmatprep.subr.mxu0 0.0
    %169 = vmatpush1.msra.mxu0 0.0
    %170 = vmatprep.subr.mxu0 0.0
    %171 = vmatpush1.msra.mxu0 0.0
    %172 = vmatprep.subr.mxu0 0.0
    %173 = vmatpush1.msra.mxu0 0.0
    %174 = vmatprep.subr.mxu0 0.0
    %175 = vmatpush1.msra.mxu0 0.0
    %176 = vmatprep.subr.mxu0 0.0
    %177 = vmatpush1.msra.mxu0 0.0
    %178 = vmatprep.subr.mxu0 0.0
    %179 = vmatpush1.msra.mxu0 0.0
    %180 = vmatprep.subr.mxu0 0.0
    %181 = vmatpush1.msra.mxu0 0.0
    %182 = vmatprep.subr.mxu0 0.0
    %183 = vmatpush1.msra.mxu0 0.0
    %184 = vmatprep.subr.mxu0 0.0
    %185 = vmatpush1.msra.mxu0 0.0
    %186 = vmatprep.subr.mxu0 0.0
    %187 = vmatpush1.msra.mxu0 0.0
    %188 = vmatprep.subr.mxu0 0.0
    %189 = vmatpush1.msra.mxu0 0.0
    %190 = vmatprep.subr.mxu0 0.0
    %191 = vmatpush1.msra.mxu0 0.0
    %192 = vmatprep.subr.mxu0 0.0
    %193 = vmatpush1.msra.mxu0 0.0
    %194 = vmatprep.subr.mxu0 0.0
    %195 = vmatpush1.msra.mxu0 0.0
    %196 = vmatprep.subr.mxu0 0.0
    %197 = vmatpush1.msra.mxu0 0.0
    %198 = vmatprep.subr.mxu0 0.0
    %199 = vmatpush1.msra.mxu0 0.0
    %200 = vmatprep.subr.mxu0 0.0
    %201 = vmatpush1.msra.mxu0 0.0
    %202 = vmatprep.subr.mxu0 0.0
    %203 = vmatpush1.msra.mxu0 0.0
    %204 = vmatprep.subr.mxu0 0.0
    %205 = vmatpush1.msra.mxu0 0.0
    %206 = vmatprep.subr.mxu0 0.0
    %207 = vmatpush1.msra.mxu0 0.0
    %208 = vmatprep.subr.mxu0 0.0
    %209 = vmatpush1.msra.mxu0 0.0
    %210 = vmatprep.subr.mxu0 0.0
    %211 = vmatpush1.msra.mxu0 0.0
    %212 = vmatprep.subr.mxu0 0.0
    %213 = vmatpush1.msra.mxu0 0.0
    %214 = vmatprep.subr.mxu0 0.0
    %215 = vmatpush1.msra.mxu0 0.0
    %216 = vmatprep.mubr.f32.mxu0 0.0
    %217 = vmatmul.mubr.f32.gmra.mrb[0].mxu0 %v145
    %v218 = vpop.f32.mrb[0].mxu0
    %v219 = vadd.f32 %v136, %v218
    %v220 = vpop.f32.mrb[0].mxu0
    %221 = vmatprep.mubr.f32.mxu0 0.0
    %222 = vmatmul.mubr.f32.gmra.mrb[0].mxu0 %v148
    %v223 = vpop.f32.mrb[0].mxu0
    %v224 = vadd.f32 %v141, %v223
    %v225 = vpop.f32.mrb[0].mxu0
    %226 = vdwg.mxu0
    %s227 = scalar_lea.vmem %s1, 32
    %v228 = vld [vmem:[%s227] sm:$0xff]
    %v229 = vld [vmem:[%s227 + $0x8] sm:$0xff]
    %230 = vrot.lane.b32.xlu0 %v50, 126
    %v231 = vpop.permute.xlu0 %230
    %v233 = vsel %vm59, %v228, 0
    %v236 = vsel %vm59, %v229, 0
    %v238 = vsel %vm66, %v231, 0
    %240 = vmatprep.subr.mxu0 0.0
    %241 = vmatpush1.msra.mxu0 %v238
    %242 = vmatprep.subr.mxu0 0.0
    %243 = vmatpush1.msra.mxu0 0.0
    %244 = vmatprep.subr.mxu0 0.0
    %245 = vmatpush1.msra.mxu0 0.0
    %246 = vmatprep.subr.mxu0 0.0
    %247 = vmatpush1.msra.mxu0 0.0
    %248 = vmatprep.subr.mxu0 0.0
    %249 = vmatpush1.msra.mxu0 0.0
    %250 = vmatprep.subr.mxu0 0.0
    %251 = vmatpush1.msra.mxu0 0.0
    %252 = vmatprep.subr.mxu0 0.0
    %253 = vmatpush1.msra.mxu0 0.0
    %254 = vmatprep.subr.mxu0 0.0
    %255 = vmatpush1.msra.mxu0 0.0
    %256 = vmatprep.subr.mxu0 0.0
    %257 = vmatpush1.msra.mxu0 0.0
    %258 = vmatprep.subr.mxu0 0.0
    %259 = vmatpush1.msra.mxu0 0.0
    %260 = vmatprep.subr.mxu0 0.0
    %261 = vmatpush1.msra.mxu0 0.0
    %262 = vmatprep.subr.mxu0 0.0
    %263 = vmatpush1.msra.mxu0 0.0
    %264 = vmatprep.subr.mxu0 0.0
    %265 = vmatpush1.msra.mxu0 0.0
    %266 = vmatprep.subr.mxu0 0.0
    %267 = vmatpush1.msra.mxu0 0.0
    %268 = vmatprep.subr.mxu0 0.0
    %269 = vmatpush1.msra.mxu0 0.0
    %270 = vmatprep.subr.mxu0 0.0
    %271 = vmatpush1.msra.mxu0 0.0
    %272 = vmatprep.subr.mxu0 0.0
    %273 = vmatpush1.msra.mxu0 0.0
    %274 = vmatprep.subr.mxu0 0.0
    %275 = vmatpush1.msra.mxu0 0.0
    %276 = vmatprep.subr.mxu0 0.0
    %277 = vmatpush1.msra.mxu0 0.0
    %278 = vmatprep.subr.mxu0 0.0
    %279 = vmatpush1.msra.mxu0 0.0
    %280 = vmatprep.subr.mxu0 0.0
    %281 = vmatpush1.msra.mxu0 0.0
    %282 = vmatprep.subr.mxu0 0.0
    %283 = vmatpush1.msra.mxu0 0.0
    %284 = vmatprep.subr.mxu0 0.0
    %285 = vmatpush1.msra.mxu0 0.0
    %286 = vmatprep.subr.mxu0 0.0
    %287 = vmatpush1.msra.mxu0 0.0
    %288 = vmatprep.subr.mxu0 0.0
    %289 = vmatpush1.msra.mxu0 0.0
    %290 = vmatprep.subr.mxu0 0.0
    %291 = vmatpush1.msra.mxu0 0.0
    %292 = vmatprep.subr.mxu0 0.0
    %293 = vmatpush1.msra.mxu0 0.0
    %294 = vmatprep.subr.mxu0 0.0
    %295 = vmatpush1.msra.mxu0 0.0
    %296 = vmatprep.subr.mxu0 0.0
    %297 = vmatpush1.msra.mxu0 0.0
    %298 = vmatprep.subr.mxu0 0.0
    %299 = vmatpush1.msra.mxu0 0.0
    %300 = vmatprep.subr.mxu0 0.0
    %301 = vmatpush1.msra.mxu0 0.0
    %302 = vmatprep.subr.mxu0 0.0
    %303 = vmatpush1.msra.mxu0 0.0
    %304 = vmatprep.mubr.f32.mxu0 0.0
    %305 = vmatmul.mubr.f32.gmra.mrb[0].mxu0 %v233
    %v306 = vpop.f32.mrb[0].mxu0
    %v307 = vadd.f32 0.0, %v306
    %v308 = vpop.f32.mrb[0].mxu0
    %309 = vmatprep.mubr.f32.mxu0 0.0
    %310 = vmatmul.mubr.f32.gmra.mrb[0].mxu0 %v236
    %v311 = vpop.f32.mrb[0].mxu0
    %v312 = vadd.f32 0.0, %v311
    %v313 = vpop.f32.mrb[0].mxu0
    %314 = vdwg.mxu0
    %v315 = vadd.f32 %v219, %v307
    %v316 = vadd.f32 %v224, %v312
    %v317 = vld [vmem:[%s2] sm:$0xff]
    %v318 = vld [vmem:[%s2 + $0x8] sm:$0xff]
    %320 = vset.pattern.permute.xlu0 0
    %321 = vperm.xlu0 %320, %v317
    %v322 = vpop.permute.xlu0 %321
    %325 = vset.pattern.permute.xlu0 0
    %326 = vperm.xlu0 %325, %v318
    %v327 = vpop.permute.xlu0 %326
    %v329 = vadd.f32 %v315, %v322
    %v330 = vadd.f32 %v316, %v327
    %v331 = vld [vmem:[%s7] sm:$0x3]
    %v332 = vld [vmem:[%s8] sm:$0xff]
    %v333 = vld [vmem:[%s8 + $0x8] sm:$0xff]
    %v334 = vld [vmem:[%s8 + $0x10] sm:$0xff]
    %v335 = vld [vmem:[%s8 + $0x18] sm:$0xff]
    %v336 = vld [vmem:[%s8 + $0x20] sm:$0x3]
    %v337 = vld [vmem:[%s5] sm:$0xff]
    %v338 = vld [vmem:[%s6] sm:$0xff]
    %v339 = vld [vmem:[%s6 + $0x8] sm:$0xff]
    %vm340 = vcmask 277504
    %v342 = vsel %vm340, %v329, 0
    %v345 = vsel %vm340, %v330, 0
    %vm347 = vcmask 1041408
    %v349 = vsel %vm347, %v336, 0
    %351 = vmatprep.subr.mxu0 0.0
    %352 = vmatpush1.msra.mxu0 %v332
    %353 = vmatprep.subr.mxu0 0.0
    %354 = vmatpush1.msra.mxu0 %v333
    %355 = vmatprep.subr.mxu0 0.0
    %356 = vmatpush1.msra.mxu0 %v334
    %357 = vmatprep.subr.mxu0 0.0
    %358 = vmatpush1.msra.mxu0 %v335
    %359 = vmatprep.subr.mxu0 0.0
    %360 = vmatpush1.msra.mxu0 %v349
    %361 = vmatprep.subr.mxu0 0.0
    %362 = vmatpush1.msra.mxu0 0.0
    %363 = vmatprep.subr.mxu0 0.0
    %364 = vmatpush1.msra.mxu0 0.0
    %365 = vmatprep.subr.mxu0 0.0
    %366 = vmatpush1.msra.mxu0 0.0
    %367 = vmatprep.subr.mxu0 0.0
    %368 = vmatpush1.msra.mxu0 0.0
    %369 = vmatprep.subr.mxu0 0.0
    %370 = vmatpush1.msra.mxu0 0.0
    %371 = vmatprep.subr.mxu0 0.0
    %372 = vmatpush1.msra.mxu0 0.0
    %373 = vmatprep.subr.mxu0 0.0
    %374 = vmatpush1.msra.mxu0 0.0
    %375 = vmatprep.subr.mxu0 0.0
    %376 = vmatpush1.msra.mxu0 0.0
    %377 = vmatprep.subr.mxu0 0.0
    %378 = vmatpush1.msra.mxu0 0.0
    %379 = vmatprep.subr.mxu0 0.0
    %380 = vmatpush1.msra.mxu0 0.0
    %381 = vmatprep.subr.mxu0 0.0
    %382 = vmatpush1.msra.mxu0 0.0
    %383 = vmatprep.subr.mxu0 0.0
    %384 = vmatpush1.msra.mxu0 0.0
    %385 = vmatprep.subr.mxu0 0.0
    %386 = vmatpush1.msra.mxu0 0.0
    %387 = vmatprep.subr.mxu0 0.0
    %388 = vmatpush1.msra.mxu0 0.0
    %389 = vmatprep.subr.mxu0 0.0
    %390 = vmatpush1.msra.mxu0 0.0
    %391 = vmatprep.subr.mxu0 0.0
    %392 = vmatpush1.msra.mxu0 0.0
    %393 = vmatprep.subr.mxu0 0.0
    %394 = vmatpush1.msra.mxu0 0.0
    %395 = vmatprep.subr.mxu0 0.0
    %396 = vmatpush1.msra.mxu0 0.0
    %397 = vmatprep.subr.mxu0 0.0
    %398 = vmatpush1.msra.mxu0 0.0
    %399 = vmatprep.subr.mxu0 0.0
    %400 = vmatpush1.msra.mxu0 0.0
    %401 = vmatprep.subr.mxu0 0.0
    %402 = vmatpush1.msra.mxu0 0.0
    %403 = vmatprep.subr.mxu0 0.0
    %404 = vmatpush1.msra.mxu0 0.0
    %405 = vmatprep.subr.mxu0 0.0
    %406 = vmatpush1.msra.mxu0 0.0
    %407 = vmatprep.subr.mxu0 0.0
    %408 = vmatpush1.msra.mxu0 0.0
    %409 = vmatprep.subr.mxu0 0.0
    %410 = vmatpush1.msra.mxu0 0.0
    %411 = vmatprep.subr.mxu0 0.0
    %412 = vmatpush1.msra.mxu0 0.0
    %413 = vmatprep.subr.mxu0 0.0
    %414 = vmatpush1.msra.mxu0 0.0
    %415 = vmatprep.mubr.f32.mxu0 0.0
    %416 = vmatmul.mubr.f32.gmra.mrb[0].mxu0 %v342
    %v417 = vpop.f32.mrb[0].mxu0
    %v418 = vadd.f32 0.0, %v417
    %v419 = vpop.f32.mrb[0].mxu0
    %420 = vmatprep.mubr.f32.mxu0 0.0
    %421 = vmatmul.mubr.f32.gmra.mrb[0].mxu0 %v345
    %v422 = vpop.f32.mrb[0].mxu0
    %v423 = vadd.f32 0.0, %v422
    %v424 = vpop.f32.mrb[0].mxu0
    %425 = vdwg.mxu0
    %vm426 = vcmask 130048
    %v428 = vsel %vm426, %v337, 0
    %430 = vmatprep.subr.mxu0 0.0
    %431 = vmatpush1.msra.mxu0 %v418
    %432 = vmatprep.subr.mxu0 0.0
    %433 = vmatpush1.msra.mxu0 %v423
    %434 = vmatprep.subr.mxu0 0.0
    %435 = vmatpush1.msra.mxu0 0.0
    %436 = vmatprep.subr.mxu0 0.0
    %437 = vmatpush1.msra.mxu0 0.0
    %438 = vmatprep.subr.mxu0 0.0
    %439 = vmatpush1.msra.mxu0 0.0
    %440 = vmatprep.subr.mxu0 0.0
    %441 = vmatpush1.msra.mxu0 0.0
    %442 = vmatprep.subr.mxu0 0.0
    %443 = vmatpush1.msra.mxu0 0.0
    %444 = vmatprep.subr.mxu0 0.0
    %445 = vmatpush1.msra.mxu0 0.0
    %446 = vmatprep.subr.mxu0 0.0
    %447 = vmatpush1.msra.mxu0 0.0
    %448 = vmatprep.subr.mxu0 0.0
    %449 = vmatpush1.msra.mxu0 0.0
    %450 = vmatprep.subr.mxu0 0.0
    %451 = vmatpush1.msra.mxu0 0.0
    %452 = vmatprep.subr.mxu0 0.0
    %453 = vmatpush1.msra.mxu0 0.0
    %454 = vmatprep.subr.mxu0 0.0
    %455 = vmatpush1.msra.mxu0 0.0
    %456 = vmatprep.subr.mxu0 0.0
    %457 = vmatpush1.msra.mxu0 0.0
    %458 = vmatprep.subr.mxu0 0.0
    %459 = vmatpush1.msra.mxu0 0.0
    %460 = vmatprep.subr.mxu0 0.0
    %461 = vmatpush1.msra.mxu0 0.0
    %462 = vmatprep.subr.mxu0 0.0
    %463 = vmatpush1.msra.mxu0 0.0
    %464 = vmatprep.subr.mxu0 0.0
    %465 = vmatpush1.msra.mxu0 0.0
    %466 = vmatprep.subr.mxu0 0.0
    %467 = vmatpush1.msra.mxu0 0.0
    %468 = vmatprep.subr.mxu0 0.0
    %469 = vmatpush1.msra.mxu0 0.0
    %470 = vmatprep.subr.mxu0 0.0
    %471 = vmatpush1.msra.mxu0 0.0
    %472 = vmatprep.subr.mxu0 0.0
    %473 = vmatpush1.msra.mxu0 0.0
    %474 = vmatprep.subr.mxu0 0.0
    %475 = vmatpush1.msra.mxu0 0.0
    %476 = vmatprep.subr.mxu0 0.0
    %477 = vmatpush1.msra.mxu0 0.0
    %478 = vmatprep.subr.mxu0 0.0
    %479 = vmatpush1.msra.mxu0 0.0
    %480 = vmatprep.subr.mxu0 0.0
    %481 = vmatpush1.msra.mxu0 0.0
    %482 = vmatprep.subr.mxu0 0.0
    %483 = vmatpush1.msra.mxu0 0.0
    %484 = vmatprep.subr.mxu0 0.0
    %485 = vmatpush1.msra.mxu0 0.0
    %486 = vmatprep.subr.mxu0 0.0
    %487 = vmatpush1.msra.mxu0 0.0
    %488 = vmatprep.subr.mxu0 0.0
    %489 = vmatpush1.msra.mxu0 0.0
    %490 = vmatprep.subr.mxu0 0.0
    %491 = vmatpush1.msra.mxu0 0.0
    %492 = vmatprep.subr.mxu0 0.0
    %493 = vmatpush1.msra.mxu0 0.0
    %494 = vmatprep.mubr.f32.mxu0 0.0
    %495 = vmatmul.mubr.f32.gmra.mrb[0].mxu0 %v428
    %v496 = vpop.f32.mrb[0].mxu0
    %v497 = vadd.f32 0.0, %v496
    %v498 = vpop.f32.mrb[0].mxu0
    %499 = vdwg.mxu0
    %vm500 = vcmask 64512
    %v502 = vsel %vm500, %v338, 0
    %v505 = vsel %vm500, %v339, 0
    %507 = vmatprep.subr.mxu0 0.0
    %508 = vmatpush1.msra.mxu0 %v497
    %509 = vmatprep.subr.mxu0 0.0
    %510 = vmatpush1.msra.mxu0 0.0
    %511 = vmatprep.subr.mxu0 0.0
    %512 = vmatpush1.msra.mxu0 0.0
    %513 = vmatprep.subr.mxu0 0.0
    %514 = vmatpush1.msra.mxu0 0.0
    %515 = vmatprep.subr.mxu0 0.0
    %516 = vmatpush1.msra.mxu0 0.0
    %517 = vmatprep.subr.mxu0 0.0
    %518 = vmatpush1.msra.mxu0 0.0
    %519 = vmatprep.subr.mxu0 0.0
    %520 = vmatpush1.msra.mxu0 0.0
    %521 = vmatprep.subr.mxu0 0.0
    %522 = vmatpush1.msra.mxu0 0.0
    %523 = vmatprep.subr.mxu0 0.0
    %524 = vmatpush1.msra.mxu0 0.0
    %525 = vmatprep.subr.mxu0 0.0
    %526 = vmatpush1.msra.mxu0 0.0
    %527 = vmatprep.subr.mxu0 0.0
    %528 = vmatpush1.msra.mxu0 0.0
    %529 = vmatprep.subr.mxu0 0.0
    %530 = vmatpush1.msra.mxu0 0.0
    %531 = vmatprep.subr.mxu0 0.0
    %532 = vmatpush1.msra.mxu0 0.0
    %533 = vmatprep.subr.mxu0 0.0
    %534 = vmatpush1.msra.mxu0 0.0
    %535 = vmatprep.subr.mxu0 0.0
    %536 = vmatpush1.msra.mxu0 0.0
    %537 = vmatprep.subr.mxu0 0.0
    %538 = vmatpush1.msra.mxu0 0.0
    %539 = vmatprep.subr.mxu0 0.0
    %540 = vmatpush1.msra.mxu0 0.0
    %541 = vmatprep.subr.mxu0 0.0
    %542 = vmatpush1.msra.mxu0 0.0
    %543 = vmatprep.subr.mxu0 0.0
    %544 = vmatpush1.msra.mxu0 0.0
    %545 = vmatprep.subr.mxu0 0.0
    %546 = vmatpush1.msra.mxu0 0.0
    %547 = vmatprep.subr.mxu0 0.0
    %548 = vmatpush1.msra.mxu0 0.0
    %549 = vmatprep.subr.mxu0 0.0
    %550 = vmatpush1.msra.mxu0 0.0
    %551 = vmatprep.subr.mxu0 0.0
    %552 = vmatpush1.msra.mxu0 0.0
    %553 = vmatprep.subr.mxu0 0.0
    %554 = vmatpush1.msra.mxu0 0.0
    %555 = vmatprep.subr.mxu0 0.0
    %556 = vmatpush1.msra.mxu0 0.0
    %557 = vmatprep.subr.mxu0 0.0
    %558 = vmatpush1.msra.mxu0 0.0
    %559 = vmatprep.subr.mxu0 0.0
    %560 = vmatpush1.msra.mxu0 0.0
    %561 = vmatprep.subr.mxu0 0.0
    %562 = vmatpush1.msra.mxu0 0.0
    %563 = vmatprep.subr.mxu0 0.0
    %564 = vmatpush1.msra.mxu0 0.0
    %565 = vmatprep.subr.mxu0 0.0
    %566 = vmatpush1.msra.mxu0 0.0
    %567 = vmatprep.subr.mxu0 0.0
    %568 = vmatpush1.msra.mxu0 0.0
    %569 = vmatprep.subr.mxu0 0.0
    %570 = vmatpush1.msra.mxu0 0.0
    %571 = vmatprep.mubr.f32.mxu0 0.0
    %572 = vmatmul.mubr.f32.gmra.mrb[0].mxu0 %v502
    %v573 = vpop.f32.mrb[0].mxu0
    %v574 = vadd.f32 0.0, %v573
    %v575 = vpop.f32.mrb[0].mxu0
    %576 = vmatprep.mubr.f32.mxu0 0.0
    %577 = vmatmul.mubr.f32.gmra.mrb[0].mxu0 %v505
    %v578 = vpop.f32.mrb[0].mxu0
    %v579 = vadd.f32 0.0, %v578
    %v580 = vpop.f32.mrb[0].mxu0
    %581 = vdwg.mxu0
    %vm582 = vcmask 15360
    %v584 = vsel %vm582, %v574, 0
    %v587 = vsel %vm582, %v579, 0
    %v590 = vsel %vm347, %v331, 0
    %592 = vmatprep.subr.mxu0 0.0
    %593 = vmatpush1.msra.mxu0 %v590
    %594 = vmatprep.subr.mxu0 0.0
    %595 = vmatpush1.msra.mxu0 0.0
    %596 = vmatprep.subr.mxu0 0.0
    %597 = vmatpush1.msra.mxu0 0.0
    %598 = vmatprep.subr.mxu0 0.0
    %599 = vmatpush1.msra.mxu0 0.0
    %600 = vmatprep.subr.mxu0 0.0
    %601 = vmatpush1.msra.mxu0 0.0
    %602 = vmatprep.subr.mxu0 0.0
    %603 = vmatpush1.msra.mxu0 0.0
    %604 = vmatprep.subr.mxu0 0.0
    %605 = vmatpush1.msra.mxu0 0.0
    %606 = vmatprep.subr.mxu0 0.0
    %607 = vmatpush1.msra.mxu0 0.0
    %608 = vmatprep.subr.mxu0 0.0
    %609 = vmatpush1.msra.mxu0 0.0
    %610 = vmatprep.subr.mxu0 0.0
    %611 = vmatpush1.msra.mxu0 0.0
    %612 = vmatprep.subr.mxu0 0.0
    %613 = vmatpush1.msra.mxu0 0.0
    %614 = vmatprep.subr.mxu0 0.0
    %615 = vmatpush1.msra.mxu0 0.0
    %616 = vmatprep.subr.mxu0 0.0
    %617 = vmatpush1.msra.mxu0 0.0
    %618 = vmatprep.subr.mxu0 0.0
    %619 = vmatpush1.msra.mxu0 0.0
    %620 = vmatprep.subr.mxu0 0.0
    %621 = vmatpush1.msra.mxu0 0.0
    %622 = vmatprep.subr.mxu0 0.0
    %623 = vmatpush1.msra.mxu0 0.0
    %624 = vmatprep.subr.mxu0 0.0
    %625 = vmatpush1.msra.mxu0 0.0
    %626 = vmatprep.subr.mxu0 0.0
    %627 = vmatpush1.msra.mxu0 0.0
    %628 = vmatprep.subr.mxu0 0.0
    %629 = vmatpush1.msra.mxu0 0.0
    %630 = vmatprep.subr.mxu0 0.0
    %631 = vmatpush1.msra.mxu0 0.0
    %632 = vmatprep.subr.mxu0 0.0
    %633 = vmatpush1.msra.mxu0 0.0
    %634 = vmatprep.subr.mxu0 0.0
    %635 = vmatpush1.msra.mxu0 0.0
    %636 = vmatprep.subr.mxu0 0.0
    %637 = vmatpush1.msra.mxu0 0.0
    %638 = vmatprep.subr.mxu0 0.0
    %639 = vmatpush1.msra.mxu0 0.0
    %640 = vmatprep.subr.mxu0 0.0
    %641 = vmatpush1.msra.mxu0 0.0
    %642 = vmatprep.subr.mxu0 0.0
    %643 = vmatpush1.msra.mxu0 0.0
    %644 = vmatprep.subr.mxu0 0.0
    %645 = vmatpush1.msra.mxu0 0.0
    %646 = vmatprep.subr.mxu0 0.0
    %647 = vmatpush1.msra.mxu0 0.0
    %648 = vmatprep.subr.mxu0 0.0
    %649 = vmatpush1.msra.mxu0 0.0
    %650 = vmatprep.subr.mxu0 0.0
    %651 = vmatpush1.msra.mxu0 0.0
    %652 = vmatprep.subr.mxu0 0.0
    %653 = vmatpush1.msra.mxu0 0.0
    %654 = vmatprep.subr.mxu0 0.0
    %655 = vmatpush1.msra.mxu0 0.0
    %656 = vmatprep.mubr.f32.mxu0 0.0
    %657 = vmatmul.mubr.f32.gmra.mrb[0].mxu0 %v584
    %v658 = vpop.f32.mrb[0].mxu0
    %v659 = vadd.f32 0.0, %v658
    %v660 = vpop.f32.mrb[0].mxu0
    %661 = vmatprep.mubr.f32.mxu0 0.0
    %662 = vmatmul.mubr.f32.gmra.mrb[0].mxu0 %v587
    %v663 = vpop.f32.mrb[0].mxu0
    %v664 = vadd.f32 0.0, %v663
    %v665 = vpop.f32.mrb[0].mxu0
    %666 = vdwg.mxu0
    %v667 = vsub.f32 %v329, %v659
    %v668 = vsub.f32 %v330, %v664
    %v669 = vmul.f32 %v667, %v667
    %v670 = vmul.f32 %v668, %v668
    %v672 = vsel %vm340, %v669, 0
    %v675 = vsel %vm340, %v670, 0
    %677 = vmatprep.subr.mxu0 0.0
    %678 = vmatpush1.msra.mxu0 %v332
    %679 = vmatprep.subr.mxu0 0.0
    %680 = vmatpush1.msra.mxu0 %v333
    %681 = vmatprep.subr.mxu0 0.0
    %682 = vmatpush1.msra.mxu0 %v334
    %683 = vmatprep.subr.mxu0 0.0
    %684 = vmatpush1.msra.mxu0 %v335
    %685 = vmatprep.subr.mxu0 0.0
    %686 = vmatpush1.msra.mxu0 %v349
    %687 = vmatprep.subr.mxu0 0.0
    %688 = vmatpush1.msra.mxu0 0.0
    %689 = vmatprep.subr.mxu0 0.0
    %690 = vmatpush1.msra.mxu0 0.0
    %691 = vmatprep.subr.mxu0 0.0
    %692 = vmatpush1.msra.mxu0 0.0
    %693 = vmatprep.subr.mxu0 0.0
    %694 = vmatpush1.msra.mxu0 0.0
    %695 = vmatprep.subr.mxu0 0.0
    %696 = vmatpush1.msra.mxu0 0.0
    %697 = vmatprep.subr.mxu0 0.0
    %698 = vmatpush1.msra.mxu0 0.0
    %699 = vmatprep.subr.mxu0 0.0
    %700 = vmatpush1.msra.mxu0 0.0
    %701 = vmatprep.subr.mxu0 0.0
    %702 = vmatpush1.msra.mxu0 0.0
    %703 = vmatprep.subr.mxu0 0.0
    %704 = vmatpush1.msra.mxu0 0.0
    %705 = vmatprep.subr.mxu0 0.0
    %706 = vmatpush1.msra.mxu0 0.0
    %707 = vmatprep.subr.mxu0 0.0
    %708 = vmatpush1.msra.mxu0 0.0
    %709 = vmatprep.subr.mxu0 0.0
    %710 = vmatpush1.msra.mxu0 0.0
    %711 = vmatprep.subr.mxu0 0.0
    %712 = vmatpush1.msra.mxu0 0.0
    %713 = vmatprep.subr.mxu0 0.0
    %714 = vmatpush1.msra.mxu0 0.0
    %715 = vmatprep.subr.mxu0 0.0
    %716 = vmatpush1.msra.mxu0 0.0
    %717 = vmatprep.subr.mxu0 0.0
    %718 = vmatpush1.msra.mxu0 0.0
    %719 = vmatprep.subr.mxu0 0.0
    %720 = vmatpush1.msra.mxu0 0.0
    %721 = vmatprep.subr.mxu0 0.0
    %722 = vmatpush1.msra.mxu0 0.0
    %723 = vmatprep.subr.mxu0 0.0
    %724 = vmatpush1.msra.mxu0 0.0
    %725 = vmatprep.subr.mxu0 0.0
    %726 = vmatpush1.msra.mxu0 0.0
    %727 = vmatprep.subr.mxu0 0.0
    %728 = vmatpush1.msra.mxu0 0.0
    %729 = vmatprep.subr.mxu0 0.0
    %730 = vmatpush1.msra.mxu0 0.0
    %731 = vmatprep.subr.mxu0 0.0
    %732 = vmatpush1.msra.mxu0 0.0
    %733 = vmatprep.subr.mxu0 0.0
    %734 = vmatpush1.msra.mxu0 0.0
    %735 = vmatprep.subr.mxu0 0.0
    %736 = vmatpush1.msra.mxu0 0.0
    %737 = vmatprep.subr.mxu0 0.0
    %738 = vmatpush1.msra.mxu0 0.0
    %739 = vmatprep.subr.mxu0 0.0
    %740 = vmatpush1.msra.mxu0 0.0
    %741 = vmatprep.mubr.f32.mxu0 0.0
    %742 = vmatmul.mubr.f32.gmra.mrb[0].mxu0 %v672
    %v743 = vpop.f32.mrb[0].mxu0
    %v744 = vadd.f32 0.0, %v743
    %v745 = vpop.f32.mrb[0].mxu0
    %746 = vmatprep.mubr.f32.mxu0 0.0
    %747 = vmatmul.mubr.f32.gmra.mrb[0].mxu0 %v675
    %v748 = vpop.f32.mrb[0].mxu0
    %v749 = vadd.f32 0.0, %v748
    %v750 = vpop.f32.mrb[0].mxu0
    %751 = vdwg.mxu0
    %752 = vmatprep.subr.mxu0 0.0
    %753 = vmatpush1.msra.mxu0 %v744
    %754 = vmatprep.subr.mxu0 0.0
    %755 = vmatpush1.msra.mxu0 %v749
    %756 = vmatprep.subr.mxu0 0.0
    %757 = vmatpush1.msra.mxu0 0.0
    %758 = vmatprep.subr.mxu0 0.0
    %759 = vmatpush1.msra.mxu0 0.0
    %760 = vmatprep.subr.mxu0 0.0
    %761 = vmatpush1.msra.mxu0 0.0
    %762 = vmatprep.subr.mxu0 0.0
    %763 = vmatpush1.msra.mxu0 0.0
    %764 = vmatprep.subr.mxu0 0.0
    %765 = vmatpush1.msra.mxu0 0.0
    %766 = vmatprep.subr.mxu0 0.0
    %767 = vmatpush1.msra.mxu0 0.0
    %768 = vmatprep.subr.mxu0 0.0
    %769 = vmatpush1.msra.mxu0 0.0
    %770 = vmatprep.subr.mxu0 0.0
    %771 = vmatpush1.msra.mxu0 0.0
    %772 = vmatprep.subr.mxu0 0.0
    %773 = vmatpush1.msra.mxu0 0.0
    %774 = vmatprep.subr.mxu0 0.0
    %775 = vmatpush1.msra.mxu0 0.0
    %776 = vmatprep.subr.mxu0 0.0
    %777 = vmatpush1.msra.mxu0 0.0
    %778 = vmatprep.subr.mxu0 0.0
    %779 = vmatpush1.msra.mxu0 0.0
    %780 = vmatprep.subr.mxu0 0.0
    %781 = vmatpush1.msra.mxu0 0.0
    %782 = vmatprep.subr.mxu0 0.0
    %783 = vmatpush1.msra.mxu0 0.0
    %784 = vmatprep.subr.mxu0 0.0
    %785 = vmatpush1.msra.mxu0 0.0
    %786 = vmatprep.subr.mxu0 0.0
    %787 = vmatpush1.msra.mxu0 0.0
    %788 = vmatprep.subr.mxu0 0.0
    %789 = vmatpush1.msra.mxu0 0.0
    %790 = vmatprep.subr.mxu0 0.0
    %791 = vmatpush1.msra.mxu0 0.0
    %792 = vmatprep.subr.mxu0 0.0
    %793 = vmatpush1.msra.mxu0 0.0
    %794 = vmatprep.subr.mxu0 0.0
    %795 = vmatpush1.msra.mxu0 0.0
    %796 = vmatprep.subr.mxu0 0.0
    %797 = vmatpush1.msra.mxu0 0.0
    %798 = vmatprep.subr.mxu0 0.0
    %799 = vmatpush1.msra.mxu0 0.0
    %800 = vmatprep.subr.mxu0 0.0
    %801 = vmatpush1.msra.mxu0 0.0
    %802 = vmatprep.subr.mxu0 0.0
    %803 = vmatpush1.msra.mxu0 0.0
    %804 = vmatprep.subr.mxu0 0.0
    %805 = vmatpush1.msra.mxu0 0.0
    %806 = vmatprep.subr.mxu0 0.0
    %807 = vmatpush1.msra.mxu0 0.0
    %808 = vmatprep.subr.mxu0 0.0
    %809 = vmatpush1.msra.mxu0 0.0
    %810 = vmatprep.subr.mxu0 0.0
    %811 = vmatpush1.msra.mxu0 0.0
    %812 = vmatprep.subr.mxu0 0.0
    %813 = vmatpush1.msra.mxu0 0.0
    %814 = vmatprep.subr.mxu0 0.0
    %815 = vmatpush1.msra.mxu0 0.0
    %816 = vmatprep.mubr.f32.mxu0 0.0
    %817 = vmatmul.mubr.f32.gmra.mrb[0].mxu0 %v428
    %v818 = vpop.f32.mrb[0].mxu0
    %v819 = vadd.f32 1e-05, %v818
    %v820 = vpop.f32.mrb[0].mxu0
    %821 = vdwg.mxu0
    %v822 = vrsqrt.pop %v819
    %823 = vmatprep.subr.mxu0 0.0
    %824 = vmatpush1.msra.mxu0 %v822
    %825 = vmatprep.subr.mxu0 0.0
    %826 = vmatpush1.msra.mxu0 0.0
    %827 = vmatprep.subr.mxu0 0.0
    %828 = vmatpush1.msra.mxu0 0.0
    %829 = vmatprep.subr.mxu0 0.0
    %830 = vmatpush1.msra.mxu0 0.0
    %831 = vmatprep.subr.mxu0 0.0
    %832 = vmatpush1.msra.mxu0 0.0
    %833 = vmatprep.subr.mxu0 0.0
    %834 = vmatpush1.msra.mxu0 0.0
    %835 = vmatprep.subr.mxu0 0.0
    %836 = vmatpush1.msra.mxu0 0.0
    %837 = vmatprep.subr.mxu0 0.0
    %838 = vmatpush1.msra.mxu0 0.0
    %839 = vmatprep.subr.mxu0 0.0
    %840 = vmatpush1.msra.mxu0 0.0
    %841 = vmatprep.subr.mxu0 0.0
    %842 = vmatpush1.msra.mxu0 0.0
    %843 = vmatprep.subr.mxu0 0.0
    %844 = vmatpush1.msra.mxu0 0.0
    %845 = vmatprep.subr.mxu0 0.0
    %846 = vmatpush1.msra.mxu0 0.0
    %847 = vmatprep.subr.mxu0 0.0
    %848 = vmatpush1.msra.mxu0 0.0
    %849 = vmatprep.subr.mxu0 0.0
    %850 = vmatpush1.msra.mxu0 0.0
    %851 = vmatprep.subr.mxu0 0.0
    %852 = vmatpush1.msra.mxu0 0.0
    %853 = vmatprep.subr.mxu0 0.0
    %854 = vmatpush1.msra.mxu0 0.0
    %855 = vmatprep.subr.mxu0 0.0
    %856 = vmatpush1.msra.mxu0 0.0
    %857 = vmatprep.subr.mxu0 0.0
    %858 = vmatpush1.msra.mxu0 0.0
    %859 = vmatprep.subr.mxu0 0.0
    %860 = vmatpush1.msra.mxu0 0.0
    %861 = vmatprep.subr.mxu0 0.0
    %862 = vmatpush1.msra.mxu0 0.0
    %863 = vmatprep.subr.mxu0 0.0
    %864 = vmatpush1.msra.mxu0 0.0
    %865 = vmatprep.subr.mxu0 0.0
    %866 = vmatpush1.msra.mxu0 0.0
    %867 = vmatprep.subr.mxu0 0.0
    %868 = vmatpush1.msra.mxu0 0.0
    %869 = vmatprep.subr.mxu0 0.0
    %870 = vmatpush1.msra.mxu0 0.0
    %871 = vmatprep.subr.mxu0 0.0
    %872 = vmatpush1.msra.mxu0 0.0
    %873 = vmatprep.subr.mxu0 0.0
    %874 = vmatpush1.msra.mxu0 0.0
    %875 = vmatprep.subr.mxu0 0.0
    %876 = vmatpush1.msra.mxu0 0.0
    %877 = vmatprep.subr.mxu0 0.0
    %878 = vmatpush1.msra.mxu0 0.0
    %879 = vmatprep.subr.mxu0 0.0
    %880 = vmatpush1.msra.mxu0 0.0
    %881 = vmatprep.subr.mxu0 0.0
    %882 = vmatpush1.msra.mxu0 0.0
    %883 = vmatprep.subr.mxu0 0.0
    %884 = vmatpush1.msra.mxu0 0.0
    %885 = vmatprep.subr.mxu0 0.0
    %886 = vmatpush1.msra.mxu0 0.0
    %887 = vmatprep.mubr.f32.mxu0 0.0
    %888 = vmatmul.mubr.f32.gmra.mrb[0].mxu0 %v502
    %v889 = vpop.f32.mrb[0].mxu0
    %v890 = vadd.f32 0.0, %v889
    %v891 = vpop.f32.mrb[0].mxu0
    %892 = vmatprep.mubr.f32.mxu0 0.0
    %893 = vmatmul.mubr.f32.gmra.mrb[0].mxu0 %v505
    %v894 = vpop.f32.mrb[0].mxu0
    %v895 = vadd.f32 0.0, %v894
    %v896 = vpop.f32.mrb[0].mxu0
    %897 = vdwg.mxu0
    %v898 = vld [vmem:[%s3] sm:$0xff]
    %v899 = vld [vmem:[%s3 + $0x8] sm:$0xff]
    %901 = vset.pattern.permute.xlu0 0
    %902 = vperm.xlu0 %901, %v898
    %v903 = vpop.permute.xlu0 %902
    %906 = vset.pattern.permute.xlu0 0
    %907 = vperm.xlu0 %906, %v899
    %v908 = vpop.permute.xlu0 %907
    %v910 = vmul.f32 %v890, %v903
    %v911 = vmul.f32 %v895, %v908
    %v913 = vsel %vm582, %v910, 0
    %v916 = vsel %vm582, %v911, 0
    %918 = vmatprep.subr.mxu0 0.0
    %919 = vmatpush1.msra.mxu0 %v590
    %920 = vmatprep.subr.mxu0 0.0
    %921 = vmatpush1.msra.mxu0 0.0
    %922 = vmatprep.subr.mxu0 0.0
    %923 = vmatpush1.msra.mxu0 0.0
    %924 = vmatprep.subr.mxu0 0.0
    %925 = vmatpush1.msra.mxu0 0.0
    %926 = vmatprep.subr.mxu0 0.0
    %927 = vmatpush1.msra.mxu0 0.0
    %928 = vmatprep.subr.mxu0 0.0
    %929 = vmatpush1.msra.mxu0 0.0
    %930 = vmatprep.subr.mxu0 0.0
    %931 = vmatpush1.msra.mxu0 0.0
    %932 = vmatprep.subr.mxu0 0.0
    %933 = vmatpush1.msra.mxu0 0.0
    %934 = vmatprep.subr.mxu0 0.0
    %935 = vmatpush1.msra.mxu0 0.0
    %936 = vmatprep.subr.mxu0 0.0
    %937 = vmatpush1.msra.mxu0 0.0
    %938 = vmatprep.subr.mxu0 0.0
    %939 = vmatpush1.msra.mxu0 0.0
    %940 = vmatprep.subr.mxu0 0.0
    %941 = vmatpush1.msra.mxu0 0.0
    %942 = vmatprep.subr.mxu0 0.0
    %943 = vmatpush1.msra.mxu0 0.0
    %944 = vmatprep.subr.mxu0 0.0
    %945 = vmatpush1.msra.mxu0 0.0
    %946 = vmatprep.subr.mxu0 0.0
    %947 = vmatpush1.msra.mxu0 0.0
    %948 = vmatprep.subr.mxu0 0.0
    %949 = vmatpush1.msra.mxu0 0.0
    %950 = vmatprep.subr.mxu0 0.0
    %951 = vmatpush1.msra.mxu0 0.0
    %952 = vmatprep.subr.mxu0 0.0
    %953 = vmatpush1.msra.mxu0 0.0
    %954 = vmatprep.subr.mxu0 0.0
    %955 = vmatpush1.msra.mxu0 0.0
    %956 = vmatprep.subr.mxu0 0.0
    %957 = vmatpush1.msra.mxu0 0.0
    %958 = vmatprep.subr.mxu0 0.0
    %959 = vmatpush1.msra.mxu0 0.0
    %960 = vmatprep.subr.mxu0 0.0
    %961 = vmatpush1.msra.mxu0 0.0
    %962 = vmatprep.subr.mxu0 0.0
    %963 = vmatpush1.msra.mxu0 0.0
    %964 = vmatprep.subr.mxu0 0.0
    %965 = vmatpush1.msra.mxu0 0.0
    %966 = vmatprep.subr.mxu0 0.0
    %967 = vmatpush1.msra.mxu0 0.0
    %968 = vmatprep.subr.mxu0 0.0
    %969 = vmatpush1.msra.mxu0 0.0
    %970 = vmatprep.subr.mxu0 0.0
    %971 = vmatpush1.msra.mxu0 0.0
    %972 = vmatprep.subr.mxu0 0.0
    %973 = vmatpush1.msra.mxu0 0.0
    %974 = vmatprep.subr.mxu0 0.0
    %975 = vmatpush1.msra.mxu0 0.0
    %976 = vmatprep.subr.mxu0 0.0
    %977 = vmatpush1.msra.mxu0 0.0
    %978 = vmatprep.subr.mxu0 0.0
    %979 = vmatpush1.msra.mxu0 0.0
    %980 = vmatprep.subr.mxu0 0.0
    %981 = vmatpush1.msra.mxu0 0.0
    %982 = vmatprep.mubr.f32.mxu0 0.0
    %983 = vmatmul.mubr.f32.gmra.mrb[0].mxu0 %v913
    %v984 = vpop.f32.mrb[0].mxu0
    %v985 = vadd.f32 0.0, %v984
    %v986 = vpop.f32.mrb[0].mxu0
    %987 = vmatprep.mubr.f32.mxu0 0.0
    %988 = vmatmul.mubr.f32.gmra.mrb[0].mxu0 %v916
    %v989 = vpop.f32.mrb[0].mxu0
    %v990 = vadd.f32 0.0, %v989
    %v991 = vpop.f32.mrb[0].mxu0
    %992 = vdwg.mxu0
    %v993 = vmul.f32 %v667, %v985
    %v994 = vmul.f32 %v668, %v990
    %v995 = vld [vmem:[%s4] sm:$0xff]
    %v996 = vld [vmem:[%s4 + $0x8] sm:$0xff]
    %998 = vset.pattern.permute.xlu0 0
    %999 = vperm.xlu0 %998, %v995
    %v1000 = vpop.permute.xlu0 %999
    %1003 = vset.pattern.permute.xlu0 0
    %1004 = vperm.xlu0 %1003, %v996
    %v1005 = vpop.permute.xlu0 %1004
    %v1007 = vadd.f32 %v993, %v1000
    %v1008 = vadd.f32 %v994, %v1005
    %v1009 = vmin.f32 %v1007, 20.0
    %v1010 = vmin.f32 %v1008, 20.0
    %v1011 = vmul.f32 %v1009, 1.442695
    %v1012 = vpow.pop %v1011
    %v1013 = vmul.f32 %v1010, 1.442695
    %v1014 = vpow.pop %v1013
    %v1015 = vadd.f32 %v1012, 2.0
    %v1016 = vadd.f32 %v1014, 2.0
    %v1017 = vmul.f32 %v1012, %v1015
    %v1018 = vmul.f32 %v1014, %v1016
    %v1019 = vadd.f32 %v1017, 2.0
    %v1020 = vadd.f32 %v1018, 2.0
    %v1021 = vrcp.pop %v1019
    %v1022 = vmul.f32 1.0, %v1021
    %v1023 = vrcp.pop %v1020
    %v1024 = vmul.f32 1.0, %v1023
    %vm1025 = vcmp.gt.f32.partialorder %v1007, 20.0
    %vm1026 = vcmp.gt.f32.partialorder %v1008, 20.0
    %v1027 = vmul.f32 %v1007, %v1017
    %v1028 = vmul.f32 %v1008, %v1018
    %v1029 = vmul.f32 %v1027, %v1022
    %v1030 = vmul.f32 %v1028, %v1024
    %v1031 = vsel %vm1025, %v1007, %v1029
    %v1032 = vsel %vm1026, %v1008, %v1030
    %1033 = vst.msk [vmem:[#allocation3] sm:$0xff] %vm426, %v1031
    %1034 = vst.msk [vmem:[#allocation3 + $0x8] sm:$0xff] %vm426, %v1032
    %1037 = vrot.lane.b32.xlu0 %v1031, 110
    %v1038 = vpop.permute.xlu0 %1037
    %1039 = vrot.lane.b32.xlu0 %v1032, 110
    %v1040 = vpop.permute.xlu0 %1039
    %s1043 = scalar_lea.vmem [#allocation3], 16
    %1044 = vst.msk [vmem:[%s1043] sm:$0xff] %vm426, %v1038
    %1045 = vst.msk [vmem:[%s1043 + $0x8] sm:$0xff] %vm426, %v1040
    // Predicated region
    $region38: #{tpu_custom_call.1} parent=1 // pred_check
      _
    $region39: #{tpu_custom_call.1} parent=1 // pred_check_branch
      %1047 = sbr.rel (0) target = $region41
    $region40: #{tpu_custom_call.1} parent=1 // pred_region
      %s1049 = ssub.s32 512, 512
      %1050 = vsyncadd [#allocation4], %s1049
      %s1051 = sshll.u32 [#allocation3], 4
      %s1052 = int_to_ptr.vmem [resolvable:$true] %s1051
      %1057 = dma.vmem_to_hbm [thread:$0]  %s1052, 512, %s9, [#allocation4], 128, 128, 8
    $region41: #{tpu_custom_call.1} parent=1 // pred_fallthru
      _
    // Predicated region
    $region42: #{tpu_custom_call.1} parent=1 // pred_check
      _
    $region43: #{tpu_custom_call.1} parent=1 // pred_check_branch
      %1059 = sbr.rel (0) target = $region45
    $region44: #{tpu_custom_call.1} parent=1 // pred_region
      %1060 = dma.done [#allocation4], 512
    $region45: #{tpu_custom_call.1} parent=1 // pred_fallthru
      _
    %1061 = vsyncpa [#allocation4], 1

</llo_original>
